<compile_context>
chip_gen: v5e
topology: v5e:2x2
jax: 0.10.0
libtpu: 0.0.40
codegen_flags: <defaults>
</compile_context>

<pallas_src>
import functools

import jax
import jax.numpy as jnp
from jax.experimental import pallas as pl
from jax.experimental.pallas import tpu as pltpu


def _vmem_limit_bytes():
    """Generation-aware scoped-VMEM limit with headroom for Mosaic scratch.

    v7x: 64 MiB physical per TensorCore -> ~48 MiB usable.
    v5e/v6e: 128 MiB physical -> ~96 MiB usable.
    Falls back to a conservative 48 MiB (safe on every generation) if the
    hardware query is unavailable.
    """
    cap = None
    try:
        info = pltpu.get_tpu_info()
        for name in ("vmem_capacity_bytes", "vmem_size_bytes", "vmem_bytes"):
            val = getattr(info, name, None)
            if val:
                cap = int(val)
                break
    except Exception:
        cap = None
    if cap is None or cap <= 0:
        return 48 << 20
    limit = (cap * 3) // 4
    return int(max(32 << 20, min(limit, 100 << 20)))


def _kd_kl_kernel(new_ref, old_ref, out_ref, *, batch_size, tile_b, needs_mask):
    # new_ref/old_ref: (TB, C_old) VMEM tiles in their native dtype.
    # out_ref: (1, 8, 128) lane-dense partial-sum block.
    new = new_ref[...]
    old = old_ref[...]

    # Row maxima in the native dtype (exact for bf16/f32) -> XLU.
    new_max = jnp.max(new, axis=1, keepdims=True)
    old_max = jnp.max(old, axis=1, keepdims=True)

    # Per-expression upcast: avoids holding full f32 copies of both tiles next
    # to the native-dtype originals when inputs are bf16 (no-op for f32).
    new_shift = new.astype(jnp.float32) - new_max.astype(jnp.float32)
    old_shift = old.astype(jnp.float32) - old_max.astype(jnp.float32)

    e_new = jnp.exp(new_shift)   # EUP
    e_old = jnp.exp(old_shift)   # EUP

    # Per-row reductions (axis=1).
    lse = jnp.log(jnp.sum(e_new, axis=1, keepdims=True))          # (TB, 1)
    row_norm = jnp.sum(e_old, axis=1, keepdims=True)               # (TB, 1)
    row_dot = jnp.sum(e_old * new_shift, axis=1, keepdims=True)    # (TB, 1)

    # row_loss = -sum_c softmax(old)[c] * log_softmax(new)[c]
    #          = lse - sum_c(e_old * new_shift) / sum_c(e_old)
    # log_softmax(new) is never materialized as a (TB, C) tile.
    row_loss = lse - row_dot * pl.reciprocal(row_norm, approx=False)

    if needs_mask:
        # Only reached when b % tile_b != 0 (Python-level skip otherwise).
        # Garbage in padded rows can only make *their own* row_loss NaN/Inf
        # (all reductions are row-local); the select below replaces it with 0.
        i = pl.program_id(0)
        row_ids = i * tile_b + jax.lax.broadcasted_iota(jnp.int32, (tile_b, 128), 0)
        row_loss = jnp.where(row_ids[:, :1] < batch_size, row_loss, 0.0)

    # Lane-dense (8,128)-compliant store; wrapper reads element [i, 0, 0].
    out_ref[...] = jnp.full(out_ref.shape, jnp.sum(row_loss), dtype=jnp.float32)


def distillation_loss_kl(new_logits, old_logits, *, tile_b=None):
    """KD cross-entropy loss (distype='kl', T=1).

    new_logits: (B, C_new) student logits (C_new >= C_old allowed)
    old_logits: (B, C_old) teacher logits (treated as constants / detached)
    tile_b:     optional explicit batch-tile override (mainly for testing).
    Returns a scalar float32 loss.
    """
    b, c_old = old_logits.shape
    c_new = new_logits.shape[1]
    assert new_logits.shape[0] == b

    # Express the teacher-class column restriction in the BlockSpec when the
    # (8,128) lane rule allows it (C_old multiple of 128, or no restriction
    # needed).  Otherwise fall back to a wrapper slice for odd toy sizes.
    if c_old == c_new or c_old % 128 == 0:
        new_in = new_logits
    else:
        new_in = new_logits[:, :c_old]

    itemsize = max(jnp.dtype(new_in.dtype).itemsize,
                   jnp.dtype(old_logits.dtype).itemsize)
    sub = 16 if itemsize <= 2 else 8   # bf16 rows are sublane-packed in pairs

    vmem_limit = _vmem_limit_bytes()

    if tile_b is None:
        # Per-step VMEM model:
        #   inputs : 2 arrays x 2 pipeline buffers x (tile_b * c_old * itemsize)
        #   temps  : ~4 live f32 (tile_b, c_old) intermediates inside the kernel
        # Keep the estimated working set at <= 2/3 of the scoped limit.
        budget = (vmem_limit * 2) // 3
        bytes_per_row = c_old * (4 * itemsize + 4 * 4)
        max_tb = (budget - (1 << 20)) // max(1, bytes_per_row)
        max_tb = min(max_tb, 8192)                # sanity cap
        max_tb = max(sub, (max_tb // sub) * sub)
        tile_b = int(max_tb)
    else:
        tile_b = max(sub, (int(tile_b) // sub) * sub)

    if tile_b >= b:
        tile_b = b   # single tile; a block equal to the full dim is always legal
    num_tiles = int(pl.cdiv(b, tile_b))
    needs_mask = (b % tile_b) != 0

    kernel = functools.partial(_kd_kl_kernel, batch_size=b, tile_b=tile_b,
                               needs_mask=needs_mask)

    partials = pl.pallas_call(
        kernel,
        out_shape=jax.ShapeDtypeStruct((num_tiles, 8, 128), jnp.float32),
        grid_spec=pltpu.PrefetchScalarGridSpec(
            num_scalar_prefetch=0,
            grid=(num_tiles,),
            in_specs=[
                pl.BlockSpec((tile_b, c_old), lambda i: (i, 0)),
                pl.BlockSpec((tile_b, c_old), lambda i: (i, 0)),
            ],
            out_specs=pl.BlockSpec((1, 8, 128), lambda i: (i, 0, 0)),
        ),
        compiler_params=pltpu.CompilerParams(
            dimension_semantics=("parallel",),
            vmem_limit_bytes=int(vmem_limit),
        ),
    )(new_in, old_logits)

    # Tiny final reduction over per-tile partials; divide by B == mean(0).sum().
    return jnp.sum(partials[:, 0, 0]) / jnp.float32(b)


def _reference_kl(new_logits, old_logits):
    # Pure-JAX reference (same math as the PyTorch module).
    c_old = old_logits.shape[1]
    new = new_logits[:, :c_old].astype(jnp.float32)
    old = old_logits.astype(jnp.float32)
    log_sm_new = jax.nn.log_softmax(new, axis=1)
    sm_old = jax.nn.softmax(old, axis=1)
    return jnp.sum(jnp.mean(-sm_old * log_sm_new, axis=0))


if __name__ == "__main__":
    key = jax.random.PRNGKey(0)
    k1, k2, k3, k4 = jax.random.split(key, 4)

    # --- Small toy shape (student head wider than teacher head) ---
    B, C_NEW, C_OLD = 8, 40, 32
    new_logits = jax.random.normal(k1, (B, C_NEW), dtype=jnp.float32)
    old_logits = jax.random.normal(k2, (B, C_OLD), dtype=jnp.float32)
    loss = jax.block_until_ready(distillation_loss_kl(new_logits, old_logits))
    ref = _reference_kl(new_logits, old_logits)
    assert jnp.allclose(loss, ref, rtol=1e-5, atol=1e-5), (loss, ref)

    # --- BlockSpec column restriction (no wrapper slice), bytes-sized batch tile ---
    B2, C_NEW2, C_OLD2 = 272, 256, 128
    new2 = jax.random.normal(k3, (B2, C_NEW2), dtype=jnp.float32)
    old2 = jax.random.normal(k4, (B2, C_OLD2), dtype=jnp.float32)
    loss2 = jax.block_until_ready(distillation_loss_kl(new2, old2))
    ref2 = _reference_kl(new2, old2)
    assert jnp.allclose(loss2, ref2, rtol=1e-5, atol=1e-5), (loss2, ref2)

    # --- Multi-tile grid + padded-last-tile mask path (explicit tile override) ---
    loss2b = jax.block_until_ready(distillation_loss_kl(new2, old2, tile_b=64))
    assert jnp.allclose(loss2b, ref2, rtol=1e-5, atol=1e-5), (loss2b, ref2)

    # --- bf16 inputs (tiles stay bf16 in VMEM; per-expression upcast in kernel) ---
    loss3 = jax.block_until_ready(
        distillation_loss_kl(new2.astype(jnp.bfloat16), old2.astype(jnp.bfloat16)))
    ref3 = _reference_kl(new2.astype(jnp.bfloat16), old2.astype(jnp.bfloat16))
    assert jnp.allclose(loss3, ref3, rtol=2e-2, atol=2e-2), (loss3, ref3)

    print("KERNEL_OK")
</pallas_src>

<mosaic_0001>
module attributes {stable_mosaic.version = 11 : i64} {
  func.func @_kd_kl_kernel(%arg0: i32, %arg1: memref<8x32xf32, #tpu.memory_space<vmem>>, %arg2: memref<8x32xf32, #tpu.memory_space<vmem>>, %arg3: memref<1x8x128xf32, #tpu.memory_space<vmem>>) attributes {dimension_semantics = [#tpu.dimension_semantics<parallel>], iteration_bounds = array<i64: 1>, scalar_prefetch = 0 : i64, scratch_operands = 0 : i64, tpu.core_type = #tpu.core_type<tc>, window_params = [{transform_indices = @transform_0, window_bounds = array<i64: 8, 32>}, {transform_indices = @transform_1, window_bounds = array<i64: 8, 32>}, {transform_indices = @transform_2, window_bounds = array<i64: 1, 8, 128>}]} {
    %c0 = arith.constant 0 : index
    %c0_0 = arith.constant 0 : index
    %0 = vector.load %arg1[%c0, %c0_0] : memref<8x32xf32, #tpu.memory_space<vmem>>, vector<8x32xf32>
    %c0_1 = arith.constant 0 : index
    %c0_2 = arith.constant 0 : index
    %1 = vector.load %arg2[%c0_1, %c0_2] : memref<8x32xf32, #tpu.memory_space<vmem>>, vector<8x32xf32>
    %cst = arith.constant dense<0xFF800000> : vector<8xf32>
    %2 = vector.multi_reduction <maximumf>, %0, %cst [1] : vector<8x32xf32> to vector<8xf32>
    %3 = vector.shape_cast %2 : vector<8xf32> to vector<8x1xf32>
    %cst_3 = arith.constant dense<0xFF800000> : vector<8xf32>
    %4 = vector.multi_reduction <maximumf>, %1, %cst_3 [1] : vector<8x32xf32> to vector<8xf32>
    %5 = vector.shape_cast %4 : vector<8xf32> to vector<8x1xf32>
    %6 = vector.broadcast %3 : vector<8x1xf32> to vector<8x32xf32>
    %7 = arith.subf %0, %6 : vector<8x32xf32>
    %8 = vector.broadcast %5 : vector<8x1xf32> to vector<8x32xf32>
    %9 = arith.subf %1, %8 : vector<8x32xf32>
    %10 = math.exp %7 : vector<8x32xf32>
    %11 = math.exp %9 : vector<8x32xf32>
    %cst_4 = arith.constant dense<0.000000e+00> : vector<8xf32>
    %12 = vector.multi_reduction <add>, %10, %cst_4 [1] : vector<8x32xf32> to vector<8xf32>
    %13 = vector.shape_cast %12 : vector<8xf32> to vector<8x1xf32>
    %14 = math.log %13 : vector<8x1xf32>
    %cst_5 = arith.constant dense<0.000000e+00> : vector<8xf32>
    %15 = vector.multi_reduction <add>, %11, %cst_5 [1] : vector<8x32xf32> to vector<8xf32>
    %16 = vector.shape_cast %15 : vector<8xf32> to vector<8x1xf32>
    %17 = arith.mulf %11, %7 : vector<8x32xf32>
    %cst_6 = arith.constant dense<0.000000e+00> : vector<8xf32>
    %18 = vector.multi_reduction <add>, %17, %cst_6 [1] : vector<8x32xf32> to vector<8xf32>
    %19 = vector.shape_cast %18 : vector<8xf32> to vector<8x1xf32>
    %20 = tpu.reciprocal %16 : vector<8x1xf32> -> vector<8x1xf32>
    %21 = arith.mulf %19, %20 : vector<8x1xf32>
    %22 = arith.subf %14, %21 : vector<8x1xf32>
    %23 = vector.shape_cast %22 : vector<8x1xf32> to vector<1x8x1xf32>
    %cst_7 = arith.constant dense<0.000000e+00> : vector<1xf32>
    %24 = vector.multi_reduction <add>, %23, %cst_7 [1, 2] : vector<1x8x1xf32> to vector<1xf32>
    %25 = vector.shape_cast %24 : vector<1xf32> to vector<1x1x1xf32>
    %26 = vector.extract %25[0, 0, 0] : f32 from vector<1x1x1xf32>
    %27 = vector.broadcast %26 : f32 to vector<1x8x128xf32>
    %c0_8 = arith.constant 0 : index
    %c0_9 = arith.constant 0 : index
    %c0_10 = arith.constant 0 : index
    %28 = vector.load %arg3[%c0_8, %c0_9, %c0_10] : memref<1x8x128xf32, #tpu.memory_space<vmem>>, vector<1x8x128xf32>
    tpu.vector_store %arg3[%c0_8, %c0_9, %c0_10], %27 {strides = array<i32>} : memref<1x8x128xf32, #tpu.memory_space<vmem>>, vector<1x8x128xf32>,
    return
  }
  func.func @transform_0(%arg0: i32) -> (i32, i32) {
    %c0_i32 = arith.constant 0 : i32
    %c0_i32_0 = arith.constant 0 : i32
    return %arg0, %c0_i32 : i32, i32
  }
  func.func @transform_1(%arg0: i32) -> (i32, i32) {
    %c0_i32 = arith.constant 0 : i32
    %c0_i32_0 = arith.constant 0 : i32
    return %arg0, %c0_i32 : i32, i32
  }
  func.func @transform_2(%arg0: i32) -> (i32, i32, i32) {
    %c0_i32 = arith.constant 0 : i32
    %c0_i32_0 = arith.constant 0 : i32
    %c0_i32_1 = arith.constant 0 : i32
    return %arg0, %c0_i32, %c0_i32_0 : i32, i32, i32
  }
}

</mosaic_0001>

<llo_original>
// kernel: tpu_custom_call.1
$region0: #{tpu_custom_call.1}
  #allocation0 [shape = 'u32[]', space=smem, size = 0x4, offset = 0x4, fixed_abs, tag = 'smem constant byte address 0x4 - core index']
  #allocation1 [shape = 'u32[72,128]{1,0:T(1,128)}', space=vmem, size = 0x9000, scoped, tag = 'internal scratch']
  %s0 = inlined_call_operand.hbm [shape: f32[8,32], index: 0, kind: input, shape index: {}]
  %s1 = inlined_call_operand.hbm [shape: f32[8,32], index: 1, kind: input, shape index: {}]
  %s2 = inlined_call_operand.hbm [shape: f32[1,8,128], index: 2, kind: output, shape index: {}]
  %s3 = sld [smem:[#allocation0]]
  $region26: #{tpu_custom_call.1} parent=0
    _
  %s5 = ssub.s32 1, %s3
  %s6 = scalar_select 0, %s5, %s3
  $region1: #{tpu_custom_call.1} parent=0
    #allocation2 [shape = 'u8[4096]{0}', space=vmem, size = 0x1000, scoped, tag = 'input window, operand 0, single buffered']
    #allocation3 [shape = 's32[1]{0}', space=sflag, size = 0x4, scoped, tag = 'scoped memory for tpu_custom_call.1']
    #allocation4 [shape = 's32[1]{0}', space=sflag, size = 0x4, scoped, tag = 'scoped memory for tpu_custom_call.1']
    #allocation5 [shape = 'u8[4096]{0}', space=vmem, size = 0x1000, scoped, tag = 'input window, operand 1, single buffered']
    #allocation6 [shape = 's32[1]{0}', space=sflag, size = 0x4, scoped, tag = 'scoped memory for tpu_custom_call.1']
    #allocation7 [shape = 'u8[4096]{0}', space=vmem, size = 0x1000, scoped, tag = 'output window, operand 0, single buffered']
    %7 = vsyncpa [#allocation3], 0
    %8 = vsyncpa [#allocation6], 0
    %9 = vsyncpa [#allocation4], 0
    // Predicated region
    $region2: #{tpu_custom_call.1} parent=1 // pred_check
      _
    $region3: #{tpu_custom_call.1} parent=1 // pred_check_branch
      %11 = sbr.rel (0) target = $region5
    $region4: #{tpu_custom_call.1} parent=1 // pred_region
      %13 = vsyncadd [#allocation3], 0
      %s15 = sshll.u32 %s0, 4
      %s16 = int_to_ptr.hbm [resolvable:$true] %s15
      %s17 = sshll.u32 [#allocation2], 4
      %s18 = int_to_ptr.vmem [resolvable:$true] %s17
      %20 = dma.hbm_to_vmem [thread:$0]  %s16, 128, %s18, [#allocation3]
    $region5: #{tpu_custom_call.1} parent=1 // pred_fallthru
      _
    // Predicated region
    $region6: #{tpu_custom_call.1} parent=1 // pred_check
      _
    $region7: #{tpu_custom_call.1} parent=1 // pred_check_branch
      %22 = sbr.rel (0) target = $region9
    $region8: #{tpu_custom_call.1} parent=1 // pred_region
      %24 = vsyncadd [#allocation6], 0
      %s26 = sshll.u32 %s1, 4
      %s27 = int_to_ptr.hbm [resolvable:$true] %s26
      %s28 = sshll.u32 [#allocation5], 4
      %s29 = int_to_ptr.vmem [resolvable:$true] %s28
      %31 = dma.hbm_to_vmem [thread:$0]  %s27, 128, %s29, [#allocation6]
    $region9: #{tpu_custom_call.1} parent=1 // pred_fallthru
      _
    // Predicated region
    $region10: #{tpu_custom_call.1} parent=1 // pred_check
      _
    $region11: #{tpu_custom_call.1} parent=1 // pred_check_branch
      %33 = sbr.rel (0) target = $region13
    $region12: #{tpu_custom_call.1} parent=1 // pred_region
      %35 = dma.done [#allocation3], 128
    $region13: #{tpu_custom_call.1} parent=1 // pred_fallthru
      _
    // Predicated region
    $region14: #{tpu_custom_call.1} parent=1 // pred_check
      _
    $region15: #{tpu_custom_call.1} parent=1 // pred_check_branch
      %37 = sbr.rel (0) target = $region17
    $region16: #{tpu_custom_call.1} parent=1 // pred_region
      %39 = dma.done [#allocation6], 128
    $region17: #{tpu_custom_call.1} parent=1 // pred_fallthru
      _
    %v40 = vld [vmem:[#allocation2] sm:$0xff]
    %v41 = vld [vmem:[#allocation5] sm:$0xff]
    %vm42 = vcmask 261120
    %v43 = vsel %vm42, %v40, -inf
    %44 = vmax.xlane.f32.xlu0 %v43
    %v45 = vpop.xlane.xlu0 %44
    %v46 = vsel %vm42, %v41, -inf
    %47 = vmax.xlane.f32.xlu0 %v46
    %v48 = vpop.xlane.xlu0 %47
    %v49 = vsub.f32 %v40, %v45
    %v50 = vsub.f32 %v41, %v48
    %v51 = vmul.f32 %v49, 1.442695
    %v52 = vpow.pop %v51
    %v53 = vmul.f32 %v50, 1.442695
    %v54 = vpow.pop %v53
    %v55 = vsel %vm42, %v52, 0.0
    %56 = vadd.xlane.f32.xlu0 %v55
    %v57 = vpop.xlane.xlu0 %56
    %v58 = vlog2.pop %v57
    %v59 = vmul.f32 %v58, 0.6931472
    %v60 = vsel %vm42, %v54, 0.0
    %61 = vadd.xlane.f32.xlu0 %v60
    %v62 = vpop.xlane.xlu0 %61
    %v63 = vmul.f32 %v54, %v49
    %v64 = vsel %vm42, %v63, 0.0
    %65 = vadd.xlane.f32.xlu0 %v64
    %v66 = vpop.xlane.xlu0 %65
    %v67 = vrcp.pop %v62
    %v68 = vmul.f32 %v62, %v67
    %v69 = vsub.f32 1.0, %v68
    %v70 = vmul.f32 %v67, %v69
    %v71 = vadd.f32 %v67, %v70
    %vm72 = vweird.f32 %v62
    %vm73 = vweird.f32 %v67
    %vm74 = vmor %vm72, %vm73
    %v75 = vsel %vm74, %v67, %v71
    %v76 = vand.u32 2147483647, %v62
    %vm77 = vcmp.eq.f32.partialorder %v76, 8.507059e+37
    %v78 = vand.u32 %v62, 2147483648
    %v79 = vor.u32 1.1754944e-38, %v78
    %v80 = vsel %vm77, %v79, %v75
    %v81 = vmul.f32 %v66, %v80
    %v82 = vsub.f32 %v59, %v81
    %vm83 = vcmask 7168
    %v84 = vsel %vm83, %v82, 0.0
    %85 = vadd.xlane.f32.xlu0 %v84
    %v86 = vpop.xlane.xlu0 %85
    %v87 = vrot.slane %v86, 4
    %v88 = vadd.f32 %v86, %v87
    %v89 = vrot.slane %v88, 2
    %v90 = vadd.f32 %v88, %v89
    %v91 = vrot.slane %v90, 1
    %v92 = vadd.f32 %v90, %v91
    %s93 = vtos %v92
    %v94 = vstv %s93
    %95 = vst [vmem:[#allocation7] sm:$0xff] %v94
    // Predicated region
    $region18: #{tpu_custom_call.1} parent=1 // pred_check
      _
    $region19: #{tpu_custom_call.1} parent=1 // pred_check_branch
      %97 = sbr.rel (0) target = $region21
    $region20: #{tpu_custom_call.1} parent=1 // pred_region
      %99 = vsyncadd [#allocation4], 0
      %s101 = sshll.u32 [#allocation7], 4
      %s102 = int_to_ptr.vmem [resolvable:$true] %s101
      %s103 = sshll.u32 %s2, 4
      %s104 = int_to_ptr.hbm [resolvable:$true] %s103
      %106 = dma.vmem_to_hbm [thread:$0]  %s102, 128, %s104, [#allocation4]
    $region21: #{tpu_custom_call.1} parent=1 // pred_fallthru
      _
    // Predicated region
    $region22: #{tpu_custom_call.1} parent=1 // pred_check
      _
    $region23: #{tpu_custom_call.1} parent=1 // pred_check_branch
      %108 = sbr.rel (0) target = $region25
    $region24: #{tpu_custom_call.1} parent=1 // pred_region
      %110 = dma.done [#allocation4], 128
    $region25: #{tpu_custom_call.1} parent=1 // pred_fallthru
      _
    %111 = vsyncpa [#allocation3], 1
    %112 = vsyncpa [#allocation6], 1
    %113 = vsyncpa [#allocation4], 1

</llo_original>
